<compile_context>
chip_gen: v7x
topology: tpu7x:2x2x1
jax: 0.10.0
libtpu: 0.0.40
codegen_flags: <defaults>
</compile_context>

<pallas_src>
import functools

import jax
import jax.numpy as jnp
from jax.experimental import pallas as pl
from jax.experimental.pallas import tpu as pltpu

CONTEXT_FRAMES = 10
TACTILE_DIM = 48
ACTION_DIM = 6
ACTION_FRAMES = 20

ACT_FLAT = ACTION_DIM * ACTION_FRAMES        # 120
TAC_FLAT = TACTILE_DIM * CONTEXT_FRAMES      # 480
IN_FEATURES = ACT_FLAT + TAC_FLAT            # 600
OUT_FEATURES = TACTILE_DIM * CONTEXT_FRAMES  # 480


def _round_up(x, m):
    return ((x + m - 1) // m) * m


def _is_multi_tc_chip():
    """True on chips with 2 TensorCores (v7x) so we keep >=2 grid steps."""
    try:
        kind = jax.devices()[0].device_kind.lower()
    except Exception:
        return False
    return "v7" in kind


_MULTI_TC = _is_multi_tc_chip()
# Single-TC chips (v5e/v6e): big tiles to amortize ~0.35us per-step overhead.
# v7x: cap at 256 rows so mid-size batches still give both TCs work.
MAX_TILE_B = 256 if _MULTI_TC else 1024


def prepare_params(weight, bias):
    """One-time (offline) parameter preprocessing.

    weight: (480, 600) PyTorch nn.Linear layout (out_features, in_features)
    bias  : (480,)
    Returns bf16 (K, N) weight slabs for the action / tactile halves of the
    concatenated input (cat order is (actions, tactile)) and an f32 (1, N) bias.
    """
    w = jnp.asarray(weight, jnp.float32)
    b = jnp.asarray(bias, jnp.float32)
    w_act = w[:, :ACT_FLAT].T.astype(jnp.bfloat16)   # (120, 480)
    w_tac = w[:, ACT_FLAT:].T.astype(jnp.bfloat16)   # (480, 480)
    b2d = b.reshape(1, OUT_FEATURES).astype(jnp.float32)
    return w_act, w_tac, b2d


def _acmlp_kernel(act_ref, tac_ref, w_act_ref, w_tac_ref, b_ref, o_ref):
    # act: (tB, 120) f32, tac: (tB, 480) f32
    # w_act: (120, 480) bf16, w_tac: (480, 480) bf16, b: (1, 480) f32
    act = act_ref[...].astype(jnp.bfloat16)          # cheap VPU cast, hidden
    tac = tac_ref[...].astype(jnp.bfloat16)
    acc = jnp.dot(act, w_act_ref[...], preferred_element_type=jnp.float32)
    acc = acc + jnp.dot(tac, w_tac_ref[...], preferred_element_type=jnp.float32)
    acc = acc + b_ref[...]                           # f32 bias add (VPU)
    o_ref[...] = jnp.tanh(acc).astype(o_ref.dtype)   # f32 tanh (EUP), cast on store


@functools.partial(jax.jit, static_argnames=("out_dtype",))
def simple_acmlp_forward(tactiles, actions, w_act, w_tac, b2d,
                         out_dtype=jnp.float32):
    """Forward pass matching simple_ACMLP.forward.

    tactiles: (T_tac, B, 48) with T_tac >= 10
    actions : (20, B, 6)
    w_act, w_tac, b2d: outputs of prepare_params (pre-split / bf16 weights)
    returns : (B, 480) out_dtype (f32 default; bf16 halves output HBM traffic)
    """
    B = tactiles.shape[1]

    # --- glue (fused under this jit): slice / permute / flatten in f32 -----
    # TODO(synk): for tiny B (<~64), fold this glue into the kernel with
    # per-frame weight slabs so the whole forward is one custom call.
    tac = jnp.transpose(tactiles[:CONTEXT_FRAMES], (1, 0, 2)).reshape(B, TAC_FLAT)
    tac = tac.astype(jnp.float32)
    act = jnp.transpose(actions, (1, 0, 2)).reshape(B, ACT_FLAT).astype(jnp.float32)

    # --- batch tiling: padding bounded by ~8*n_b rows, not by tile_b -------
    B8 = _round_up(B, 8)
    n_b = pl.cdiv(B8, MAX_TILE_B)
    if _MULTI_TC and n_b < 2 and B8 >= 16:
        n_b = 2                                    # one tile per v7x TensorCore
    tile_b = _round_up(pl.cdiv(B8, n_b), 8)        # multiple of 8, not of 2^k
    B_pad = n_b * tile_b

    if B_pad != B:
        pad_rows = B_pad - B
        act = jnp.pad(act, ((0, pad_rows), (0, 0)))
        tac = jnp.pad(tac, ((0, pad_rows), (0, 0)))

    out_itemsize = jnp.dtype(out_dtype).itemsize
    bytes_accessed = (
        B_pad * ACT_FLAT * 4 + B_pad * TAC_FLAT * 4     # f32 activations in
        + w_act.size * 2 + w_tac.size * 2               # bf16 weights in
        + b2d.size * 4                                  # f32 bias in
        + B_pad * OUT_FEATURES * out_itemsize           # output out
    )

    # TODO(synk): for steady-state inference with fixed weights, keep the bf16
    # weight slabs resident in VMEM across calls (cross-pallas_call prefetch,
    # P10) or fuse this MLP into the caller's kernel to avoid re-DMAing
    # ~0.6 MB of weights per call.
    out = pl.pallas_call(
        _acmlp_kernel,
        out_shape=jax.ShapeDtypeStruct((B_pad, OUT_FEATURES), out_dtype),
        grid=(n_b,),
        in_specs=[
            pl.BlockSpec((tile_b, ACT_FLAT), lambda i: (i, 0)),
            pl.BlockSpec((tile_b, TAC_FLAT), lambda i: (i, 0)),
            pl.BlockSpec((ACT_FLAT, OUT_FEATURES), lambda i: (0, 0)),  # resident
            pl.BlockSpec((TAC_FLAT, OUT_FEATURES), lambda i: (0, 0)),  # resident
            pl.BlockSpec((1, OUT_FEATURES), lambda i: (0, 0)),         # resident
        ],
        out_specs=pl.BlockSpec((tile_b, OUT_FEATURES), lambda i: (i, 0)),
        compiler_params=pltpu.CompilerParams(
            dimension_semantics=("parallel",),
            vmem_limit_bytes=16 << 20,   # ~10 MiB actually used at tile_b=1024
        ),
        cost_estimate=pl.CostEstimate(
            flops=2 * B_pad * IN_FEATURES * OUT_FEATURES,
            transcendentals=B_pad * OUT_FEATURES,
            bytes_accessed=int(bytes_accessed),
        ),
    )(act, tac, w_act, w_tac, b2d)

    if B_pad != B:
        out = out[:B]     # drop padded rows only; columns are already exact 480
    return out


def _reference_forward(tactiles, actions, weight, bias):
    B = tactiles.shape[1]
    tac = jnp.transpose(tactiles[:CONTEXT_FRAMES], (1, 0, 2)).reshape(B, -1)
    act = jnp.transpose(actions, (1, 0, 2)).reshape(B, -1)
    x = jnp.concatenate((act, tac), axis=1)
    return jnp.tanh(x @ weight.T + bias)


if __name__ == "__main__":
    key = jax.random.PRNGKey(0)
    k_tac, k_act, k_w, k_b = jax.random.split(key, 4)

    B = 4
    T_tac = 12  # more frames than context_frames=10, like the real data

    tactiles = jax.random.normal(k_tac, (T_tac, B, TACTILE_DIM), jnp.float32)
    actions = jax.random.normal(k_act, (ACTION_FRAMES, B, ACTION_DIM), jnp.float32)

    # Deterministic parameter init (uniform like nn.Linear's default range).
    bound = 1.0 / (IN_FEATURES ** 0.5)
    weight = jax.random.uniform(
        k_w, (OUT_FEATURES, IN_FEATURES), jnp.float32, -bound, bound)
    bias = jax.random.uniform(k_b, (OUT_FEATURES,), jnp.float32, -bound, bound)

    # One-time param prep (split / transpose / bf16) outside the hot path.
    w_act, w_tac, b2d = prepare_params(weight, bias)
    w_act, w_tac, b2d = jax.block_until_ready((w_act, w_tac, b2d))

    ref = _reference_forward(tactiles, actions, weight, bias)

    # Default f32-output path (matches PyTorch output dtype).
    out_f32 = simple_acmlp_forward(tactiles, actions, w_act, w_tac, b2d)
    out_f32 = jax.block_until_ready(out_f32)
    assert out_f32.shape == (B, OUT_FEATURES)
    assert out_f32.dtype == jnp.float32
    # bf16 MXU operands vs. f32 reference: expect ~1e-3 abs error pre-tanh.
    assert jnp.allclose(out_f32, ref, atol=2e-2, rtol=0.0), "f32 mismatch vs reference"

    # bf16-output path (halves the dominant output HBM stream at large B).
    out_bf16 = simple_acmlp_forward(tactiles, actions, w_act, w_tac, b2d,
                                    out_dtype=jnp.bfloat16)
    out_bf16 = jax.block_until_ready(out_bf16)
    assert out_bf16.shape == (B, OUT_FEATURES)
    assert out_bf16.dtype == jnp.bfloat16
    assert jnp.allclose(out_bf16.astype(jnp.float32), ref, atol=3e-2, rtol=0.0), \
        "bf16 mismatch vs reference"

    print("KERNEL_OK")
</pallas_src>

<mosaic_0001>
module attributes {stable_mosaic.version = 11 : i64} {
  func.func @_acmlp_kernel(%arg0: i32, %arg1: memref<8x120xf32, #tpu.memory_space<vmem>>, %arg2: memref<8x480xf32, #tpu.memory_space<vmem>>, %arg3: memref<120x480xbf16, #tpu.memory_space<vmem>>, %arg4: memref<480x480xbf16, #tpu.memory_space<vmem>>, %arg5: memref<1x480xf32, #tpu.memory_space<vmem>>, %arg6: memref<8x480xf32, #tpu.memory_space<vmem>>) attributes {dimension_semantics = [#tpu.dimension_semantics<parallel>], iteration_bounds = array<i64: 1>, scalar_prefetch = 0 : i64, scratch_operands = 0 : i64, tpu.core_type = #tpu.core_type<tc>, window_params = [{transform_indices = @transform_0, window_bounds = array<i64: 8, 120>}, {transform_indices = @transform_1, window_bounds = array<i64: 8, 480>}, {pipeline_mode = #tpu.pipeline_mode<synchronous>, transform_indices = @transform_2, window_bounds = array<i64: 120, 480>}, {pipeline_mode = #tpu.pipeline_mode<synchronous>, transform_indices = @transform_3, window_bounds = array<i64: 480, 480>}, {pipeline_mode = #tpu.pipeline_mode<synchronous>, transform_indices = @transform_4, window_bounds = array<i64: 1, 480>}, {transform_indices = @transform_5, window_bounds = array<i64: 8, 480>}]} {
    %c0 = arith.constant 0 : index
    %c0_0 = arith.constant 0 : index
    %0 = vector.load %arg1[%c0, %c0_0] : memref<8x120xf32, #tpu.memory_space<vmem>>, vector<8x120xf32>
    %1 = arith.truncf %0 : vector<8x120xf32> to vector<8x120xbf16>
    %c0_1 = arith.constant 0 : index
    %c0_2 = arith.constant 0 : index
    %2 = vector.load %arg2[%c0_1, %c0_2] : memref<8x480xf32, #tpu.memory_space<vmem>>, vector<8x480xf32>
    %3 = arith.truncf %2 : vector<8x480xf32> to vector<8x480xbf16>
    %c0_3 = arith.constant 0 : index
    %c0_4 = arith.constant 0 : index
    %4 = vector.load %arg3[%c0_3, %c0_4] : memref<120x480xbf16, #tpu.memory_space<vmem>>, vector<120x480xbf16>
    %cst = arith.constant dense<0.000000e+00> : vector<8x480xf32>
    %5 = tpu.matmul %1, %4, %cst {dimension_numbers = #tpu.dot_dimension_numbers<[1], [0], [0], [1], [0, 0, 1, 1], [], []>} : vector<8x120xbf16>, vector<120x480xbf16>, vector<8x480xf32> -> vector<8x480xf32>
    %c0_5 = arith.constant 0 : index
    %c0_6 = arith.constant 0 : index
    %6 = vector.load %arg4[%c0_5, %c0_6] : memref<480x480xbf16, #tpu.memory_space<vmem>>, vector<480x480xbf16>
    %cst_7 = arith.constant dense<0.000000e+00> : vector<8x480xf32>
    %7 = tpu.matmul %3, %6, %cst_7 {dimension_numbers = #tpu.dot_dimension_numbers<[1], [0], [0], [1], [0, 0, 1, 1], [], []>} : vector<8x480xbf16>, vector<480x480xbf16>, vector<8x480xf32> -> vector<8x480xf32>
    %8 = arith.addf %5, %7 : vector<8x480xf32>
    %c0_8 = arith.constant 0 : index
    %c0_9 = arith.constant 0 : index
    %9 = vector.load %arg5[%c0_8, %c0_9] : memref<1x480xf32, #tpu.memory_space<vmem>>, vector<1x480xf32>
    %10 = vector.broadcast %9 : vector<1x480xf32> to vector<8x480xf32>
    %11 = arith.addf %8, %10 : vector<8x480xf32>
    %12 = math.tanh %11 : vector<8x480xf32>
    %c0_10 = arith.constant 0 : index
    %c0_11 = arith.constant 0 : index
    %13 = vector.load %arg6[%c0_10, %c0_11] : memref<8x480xf32, #tpu.memory_space<vmem>>, vector<8x480xf32>
    tpu.vector_store %arg6[%c0_10, %c0_11], %12 {strides = array<i32>} : memref<8x480xf32, #tpu.memory_space<vmem>>, vector<8x480xf32>,
    return
  }
  func.func @transform_0(%arg0: i32) -> (i32, i32) {
    %c0_i32 = arith.constant 0 : i32
    %c0_i32_0 = arith.constant 0 : i32
    return %arg0, %c0_i32 : i32, i32
  }
  func.func @transform_1(%arg0: i32) -> (i32, i32) {
    %c0_i32 = arith.constant 0 : i32
    %c0_i32_0 = arith.constant 0 : i32
    return %arg0, %c0_i32 : i32, i32
  }
  func.func @transform_2(%arg0: i32) -> (i32, i32) {
    %c0_i32 = arith.constant 0 : i32
    %c0_i32_0 = arith.constant 0 : i32
    %c0_i32_1 = arith.constant 0 : i32
    return %c0_i32, %c0_i32_0 : i32, i32
  }
  func.func @transform_3(%arg0: i32) -> (i32, i32) {
    %c0_i32 = arith.constant 0 : i32
    %c0_i32_0 = arith.constant 0 : i32
    %c0_i32_1 = arith.constant 0 : i32
    return %c0_i32, %c0_i32_0 : i32, i32
  }
  func.func @transform_4(%arg0: i32) -> (i32, i32) {
    %c0_i32 = arith.constant 0 : i32
    %c0_i32_0 = arith.constant 0 : i32
    %c0_i32_1 = arith.constant 0 : i32
    return %c0_i32, %c0_i32_0 : i32, i32
  }
  func.func @transform_5(%arg0: i32) -> (i32, i32) {
    %c0_i32 = arith.constant 0 : i32
    %c0_i32_0 = arith.constant 0 : i32
    return %arg0, %c0_i32 : i32, i32
  }
}

</mosaic_0001>

<llo_original>
// kernel: simple_acmlp_forward.1
$region0: #{simple_acmlp_forward.1}
  #allocation0 [shape = 'u32[]', space=smem, size = 0x4, offset = 0x4, fixed_abs, tag = 'smem constant byte address 0x4 - core index']
  #allocation1 [shape = 'u32[144,128]{1,0:T(1,128)}', space=vmem, size = 0x12000, scoped, tag = 'internal scratch']
  %s0 = inlined_call_operand.vmem [shape: f32[8,120], index: 0, kind: input, shape index: {}]
  %s1 = inlined_call_operand.vmem [shape: f32[8,480], index: 1, kind: input, shape index: {}]
  %s2 = inlined_call_operand.vmem [shape: bf16[120,480], index: 2, kind: input, shape index: {}]
  %s3 = inlined_call_operand.hbm [shape: bf16[480,480], index: 3, kind: input, shape index: {}]
  %s4 = inlined_call_operand.vmem [shape: f32[1,480], index: 4, kind: input, shape index: {}]
  %s5 = inlined_call_operand.vmem [shape: f32[8,480], index: 5, kind: output, shape index: {}]
  %s6 = sld [smem:[#allocation0]]
  $region34: #{simple_acmlp_forward.1} parent=0
    _
  %s8 = ssub.s32 1, %s6
  %s9 = scalar_select 0, %s8, %s6
  $region1: #{simple_acmlp_forward.1} parent=0
    #allocation2 [shape = 'u8[491520]{0}', space=vmem, size = 0x78000, scoped, tag = 'input window, operand 3, single buffered']
    #allocation3 [shape = 's32[1]{0}', space=sflag, size = 0x4, scoped, tag = 'scoped memory for simple_acmlp_forward.1']
    %10 = vsyncpa [#allocation3], 0
    // Predicated region
    $region2: #{simple_acmlp_forward.1} parent=1 // pred_check
      _
    $region3: #{simple_acmlp_forward.1} parent=1 // pred_check_branch
      %12 = sbr.rel (0) target = $region5
    $region4: #{simple_acmlp_forward.1} parent=1 // pred_region
      _
    $region5: #{simple_acmlp_forward.1} parent=1 // pred_fallthru
      _
    // Predicated region
    $region6: #{simple_acmlp_forward.1} parent=1 // pred_check
      _
    $region7: #{simple_acmlp_forward.1} parent=1 // pred_check_branch
      %14 = sbr.rel (0) target = $region9
    $region8: #{simple_acmlp_forward.1} parent=1 // pred_region
      _
    $region9: #{simple_acmlp_forward.1} parent=1 // pred_fallthru
      _
    // Predicated region
    $region10: #{simple_acmlp_forward.1} parent=1 // pred_check
      _
    $region11: #{simple_acmlp_forward.1} parent=1 // pred_check_branch
      %16 = sbr.rel (0) target = $region13
    $region12: #{simple_acmlp_forward.1} parent=1 // pred_region
      _
    $region13: #{simple_acmlp_forward.1} parent=1 // pred_fallthru
      _
    // Predicated region
    $region14: #{simple_acmlp_forward.1} parent=1 // pred_check
      _
    $region15: #{simple_acmlp_forward.1} parent=1 // pred_check_branch
      %18 = sbr.rel (0) target = $region17
    $region16: #{simple_acmlp_forward.1} parent=1 // pred_region
      %s20 = ssub.s32 15360, 15360
      %21 = vsyncadd [#allocation3], %s20
      %s22 = sshll.u32 [#allocation2], 4
      %s23 = int_to_ptr.vmem [resolvable:$true] %s22
      %28 = dma.hbm_to_vmem [thread:$0]  %s3, 15360, %s23, [#allocation3], 256, 256, 16
    $region17: #{simple_acmlp_forward.1} parent=1 // pred_fallthru
      _
    // Predicated region
    $region18: #{simple_acmlp_forward.1} parent=1 // pred_check
      _
    $region19: #{simple_acmlp_forward.1} parent=1 // pred_check_branch
      %30 = sbr.rel (0) target = $region21
    $region20: #{simple_acmlp_forward.1} parent=1 // pred_region
      _
    $region21: #{simple_acmlp_forward.1} parent=1 // pred_fallthru
      _
    // Predicated region
    $region22: #{simple_acmlp_forward.1} parent=1 // pred_check
      _
    $region23: #{simple_acmlp_forward.1} parent=1 // pred_check_branch
      %32 = sbr.rel (0) target = $region25
    $region24: #{simple_acmlp_forward.1} parent=1 // pred_region
      %33 = dma.done [#allocation3], 15360
    $region25: #{simple_acmlp_forward.1} parent=1 // pred_fallthru
      _
    %v35 = vld [vmem:[%s0] sm:$0xff]
    %v36 = vpack.c.bf16 %v35, %v35
    %v37 = vld [vmem:[%s1] sm:$0xff]
    %v38 = vld [vmem:[%s1 + $0x8] sm:$0xff]
    %v39 = vld [vmem:[%s1 + $0x10] sm:$0xff]
    %v40 = vld [vmem:[%s1 + $0x18] sm:$0xff]
    %v41 = vpack.c.bf16 %v37, %v37
    %v42 = vpack.c.bf16 %v38, %v38
    %v43 = vpack.c.bf16 %v39, %v39
    %v44 = vpack.c.bf16 %v40, %v40
    %v45 = vld [vmem:[%s2] sm:$0xff]
    %v46 = vld [vmem:[%s2 + $0x8] sm:$0xff]
    %v47 = vld [vmem:[%s2 + $0x10] sm:$0xff]
    %v48 = vld [vmem:[%s2 + $0x18] sm:$0xff]
    %v49 = vld [vmem:[%s2 + $0x20] sm:$0xff]
    %v50 = vld [vmem:[%s2 + $0x28] sm:$0xff]
    %v51 = vld [vmem:[%s2 + $0x30] sm:$0xff]
    %v52 = vld [vmem:[%s2 + $0x38] sm:$0xff]
    %v53 = vld [vmem:[%s2 + $0x40] sm:$0xff]
    %v54 = vld [vmem:[%s2 + $0x48] sm:$0xff]
    %v55 = vld [vmem:[%s2 + $0x50] sm:$0xff]
    %v56 = vld [vmem:[%s2 + $0x58] sm:$0xff]
    %v57 = vld [vmem:[%s2 + $0x60] sm:$0xff]
    %v58 = vld [vmem:[%s2 + $0x68] sm:$0xff]
    %v59 = vld [vmem:[%s2 + $0x70] sm:$0xff]
    %v60 = vld [vmem:[%s2 + $0x78] sm:$0xff]
    %v61 = vld [vmem:[%s2 + $0x80] sm:$0xff]
    %v62 = vld [vmem:[%s2 + $0x88] sm:$0xff]
    %v63 = vld [vmem:[%s2 + $0x90] sm:$0xff]
    %v64 = vld [vmem:[%s2 + $0x98] sm:$0xff]
    %v65 = vld [vmem:[%s2 + $0xa0] sm:$0xff]
    %v66 = vld [vmem:[%s2 + $0xa8] sm:$0xff]
    %v67 = vld [vmem:[%s2 + $0xb0] sm:$0xff]
    %v68 = vld [vmem:[%s2 + $0xb8] sm:$0xff]
    %v69 = vld [vmem:[%s2 + $0xc0] sm:$0xff]
    %v70 = vld [vmem:[%s2 + $0xc8] sm:$0xff]
    %v71 = vld [vmem:[%s2 + $0xd0] sm:$0xff]
    %v72 = vld [vmem:[%s2 + $0xd8] sm:$0xff]
    %v73 = vld [vmem:[%s2 + $0xe0] sm:$0xff]
    %v74 = vld [vmem:[%s2 + $0xe8] sm:$0xff]
    %v75 = vld [vmem:[#allocation2] sm:$0xff]
    %v76 = vld [vmem:[#allocation2 + $0x8] sm:$0xff]
    %v77 = vld [vmem:[#allocation2 + $0x10] sm:$0xff]
    %v78 = vld [vmem:[#allocation2 + $0x18] sm:$0xff]
    %v79 = vld [vmem:[#allocation2 + $0x20] sm:$0xff]
    %v80 = vld [vmem:[#allocation2 + $0x28] sm:$0xff]
    %v81 = vld [vmem:[#allocation2 + $0x30] sm:$0xff]
    %v82 = vld [vmem:[#allocation2 + $0x38] sm:$0xff]
    %v83 = vld [vmem:[#allocation2 + $0x40] sm:$0xff]
    %v84 = vld [vmem:[#allocation2 + $0x48] sm:$0xff]
    %v85 = vld [vmem:[#allocation2 + $0x50] sm:$0xff]
    %v86 = vld [vmem:[#allocation2 + $0x58] sm:$0xff]
    %v87 = vld [vmem:[#allocation2 + $0x60] sm:$0xff]
    %v88 = vld [vmem:[#allocation2 + $0x68] sm:$0xff]
    %v89 = vld [vmem:[#allocation2 + $0x70] sm:$0xff]
    %v90 = vld [vmem:[#allocation2 + $0x78] sm:$0xff]
    %v91 = vld [vmem:[#allocation2 + $0x80] sm:$0xff]
    %v92 = vld [vmem:[#allocation2 + $0x88] sm:$0xff]
    %v93 = vld [vmem:[#allocation2 + $0x90] sm:$0xff]
    %v94 = vld [vmem:[#allocation2 + $0x98] sm:$0xff]
    %v95 = vld [vmem:[#allocation2 + $0xa0] sm:$0xff]
    %v96 = vld [vmem:[#allocation2 + $0xa8] sm:$0xff]
    %v97 = vld [vmem:[#allocation2 + $0xb0] sm:$0xff]
    %v98 = vld [vmem:[#allocation2 + $0xb8] sm:$0xff]
    %v99 = vld [vmem:[#allocation2 + $0xc0] sm:$0xff]
    %v100 = vld [vmem:[#allocation2 + $0xc8] sm:$0xff]
    %v101 = vld [vmem:[#allocation2 + $0xd0] sm:$0xff]
    %v102 = vld [vmem:[#allocation2 + $0xd8] sm:$0xff]
    %v103 = vld [vmem:[#allocation2 + $0xe0] sm:$0xff]
    %v104 = vld [vmem:[#allocation2 + $0xe8] sm:$0xff]
    %v105 = vld [vmem:[#allocation2 + $0xf0] sm:$0xff]
    %v106 = vld [vmem:[#allocation2 + $0xf8] sm:$0xff]
    %v107 = vld [vmem:[#allocation2 + $0x100] sm:$0xff]
    %v108 = vld [vmem:[#allocation2 + $0x108] sm:$0xff]
    %v109 = vld [vmem:[#allocation2 + $0x110] sm:$0xff]
    %v110 = vld [vmem:[#allocation2 + $0x118] sm:$0xff]
    %v111 = vld [vmem:[#allocation2 + $0x120] sm:$0xff]
    %v112 = vld [vmem:[#allocation2 + $0x128] sm:$0xff]
    %v113 = vld [vmem:[#allocation2 + $0x130] sm:$0xff]
    %v114 = vld [vmem:[#allocation2 + $0x138] sm:$0xff]
    %v115 = vld [vmem:[#allocation2 + $0x140] sm:$0xff]
    %v116 = vld [vmem:[#allocation2 + $0x148] sm:$0xff]
    %v117 = vld [vmem:[#allocation2 + $0x150] sm:$0xff]
    %v118 = vld [vmem:[#allocation2 + $0x158] sm:$0xff]
    %v119 = vld [vmem:[#allocation2 + $0x160] sm:$0xff]
    %v120 = vld [vmem:[#allocation2 + $0x168] sm:$0xff]
    %v121 = vld [vmem:[#allocation2 + $0x170] sm:$0xff]
    %v122 = vld [vmem:[#allocation2 + $0x178] sm:$0xff]
    %v123 = vld [vmem:[#allocation2 + $0x180] sm:$0xff]
    %v124 = vld [vmem:[#allocation2 + $0x188] sm:$0xff]
    %v125 = vld [vmem:[#allocation2 + $0x190] sm:$0xff]
    %v126 = vld [vmem:[#allocation2 + $0x198] sm:$0xff]
    %v127 = vld [vmem:[#allocation2 + $0x1a0] sm:$0xff]
    %v128 = vld [vmem:[#allocation2 + $0x1a8] sm:$0xff]
    %v129 = vld [vmem:[#allocation2 + $0x1b0] sm:$0xff]
    %v130 = vld [vmem:[#allocation2 + $0x1b8] sm:$0xff]
    %v131 = vld [vmem:[#allocation2 + $0x1c0] sm:$0xff]
    %v132 = vld [vmem:[#allocation2 + $0x1c8] sm:$0xff]
    %v133 = vld [vmem:[#allocation2 + $0x1d0] sm:$0xff]
    %v134 = vld [vmem:[#allocation2 + $0x1d8] sm:$0xff]
    %v135 = vld [vmem:[#allocation2 + $0x1e0] sm:$0xff]
    %v136 = vld [vmem:[#allocation2 + $0x1e8] sm:$0xff]
    %v137 = vld [vmem:[#allocation2 + $0x1f0] sm:$0xff]
    %v138 = vld [vmem:[#allocation2 + $0x1f8] sm:$0xff]
    %v139 = vld [vmem:[#allocation2 + $0x200] sm:$0xff]
    %v140 = vld [vmem:[#allocation2 + $0x208] sm:$0xff]
    %v141 = vld [vmem:[#allocation2 + $0x210] sm:$0xff]
    %v142 = vld [vmem:[#allocation2 + $0x218] sm:$0xff]
    %v143 = vld [vmem:[#allocation2 + $0x220] sm:$0xff]
    %v144 = vld [vmem:[#allocation2 + $0x228] sm:$0xff]
    %v145 = vld [vmem:[#allocation2 + $0x230] sm:$0xff]
    %v146 = vld [vmem:[#allocation2 + $0x238] sm:$0xff]
    %v147 = vld [vmem:[#allocation2 + $0x240] sm:$0xff]
    %v148 = vld [vmem:[#allocation2 + $0x248] sm:$0xff]
    %v149 = vld [vmem:[#allocation2 + $0x250] sm:$0xff]
    %v150 = vld [vmem:[#allocation2 + $0x258] sm:$0xff]
    %v151 = vld [vmem:[#allocation2 + $0x260] sm:$0xff]
    %v152 = vld [vmem:[#allocation2 + $0x268] sm:$0xff]
    %v153 = vld [vmem:[#allocation2 + $0x270] sm:$0xff]
    %v154 = vld [vmem:[#allocation2 + $0x278] sm:$0xff]
    %v155 = vld [vmem:[#allocation2 + $0x280] sm:$0xff]
    %v156 = vld [vmem:[#allocation2 + $0x288] sm:$0xff]
    %v157 = vld [vmem:[#allocation2 + $0x290] sm:$0xff]
    %v158 = vld [vmem:[#allocation2 + $0x298] sm:$0xff]
    %v159 = vld [vmem:[#allocation2 + $0x2a0] sm:$0xff]
    %v160 = vld [vmem:[#allocation2 + $0x2a8] sm:$0xff]
    %v161 = vld [vmem:[#allocation2 + $0x2b0] sm:$0xff]
    %v162 = vld [vmem:[#allocation2 + $0x2b8] sm:$0xff]
    %v163 = vld [vmem:[#allocation2 + $0x2c0] sm:$0xff]
    %v164 = vld [vmem:[#allocation2 + $0x2c8] sm:$0xff]
    %v165 = vld [vmem:[#allocation2 + $0x2d0] sm:$0xff]
    %v166 = vld [vmem:[#allocation2 + $0x2d8] sm:$0xff]
    %v167 = vld [vmem:[#allocation2 + $0x2e0] sm:$0xff]
    %v168 = vld [vmem:[#allocation2 + $0x2e8] sm:$0xff]
    %v169 = vld [vmem:[#allocation2 + $0x2f0] sm:$0xff]
    %v170 = vld [vmem:[#allocation2 + $0x2f8] sm:$0xff]
    %v171 = vld [vmem:[#allocation2 + $0x300] sm:$0xff]
    %v172 = vld [vmem:[#allocation2 + $0x308] sm:$0xff]
    %v173 = vld [vmem:[#allocation2 + $0x310] sm:$0xff]
    %v174 = vld [vmem:[#allocation2 + $0x318] sm:$0xff]
    %v175 = vld [vmem:[#allocation2 + $0x320] sm:$0xff]
    %v176 = vld [vmem:[#allocation2 + $0x328] sm:$0xff]
    %v177 = vld [vmem:[#allocation2 + $0x330] sm:$0xff]
    %v178 = vld [vmem:[#allocation2 + $0x338] sm:$0xff]
    %v179 = vld [vmem:[#allocation2 + $0x340] sm:$0xff]
    %v180 = vld [vmem:[#allocation2 + $0x348] sm:$0xff]
    %v181 = vld [vmem:[#allocation2 + $0x350] sm:$0xff]
    %v182 = vld [vmem:[#allocation2 + $0x358] sm:$0xff]
    %v183 = vld [vmem:[#allocation2 + $0x360] sm:$0xff]
    %v184 = vld [vmem:[#allocation2 + $0x368] sm:$0xff]
    %v185 = vld [vmem:[#allocation2 + $0x370] sm:$0xff]
    %v186 = vld [vmem:[#allocation2 + $0x378] sm:$0xff]
    %v187 = vld [vmem:[#allocation2 + $0x380] sm:$0xff]
    %v188 = vld [vmem:[#allocation2 + $0x388] sm:$0xff]
    %v189 = vld [vmem:[#allocation2 + $0x390] sm:$0xff]
    %v190 = vld [vmem:[#allocation2 + $0x398] sm:$0xff]
    %v191 = vld [vmem:[#allocation2 + $0x3a0] sm:$0xff]
    %v192 = vld [vmem:[#allocation2 + $0x3a8] sm:$0xff]
    %v193 = vld [vmem:[#allocation2 + $0x3b0] sm:$0xff]
    %v194 = vld [vmem:[#allocation2 + $0x3b8] sm:$0xff]
    %v315 = vunpack.c.l.b16 %v75
    %v316 = vunpack.c.h.b16 %v75
    %v317 = vunpack.c.l.b16 %v76
    %v318 = vunpack.c.h.b16 %v76
    %v319 = vunpack.c.l.b16 %v77
    %v320 = vunpack.c.h.b16 %v77
    %v321 = vunpack.c.l.b16 %v78
    %v322 = vunpack.c.h.b16 %v78
    %v323 = vunpack.c.l.b16 %v79
    %v324 = vunpack.c.h.b16 %v79
    %v325 = vunpack.c.l.b16 %v80
    %v326 = vunpack.c.h.b16 %v80
    %v327 = vunpack.c.l.b16 %v81
    %v328 = vunpack.c.h.b16 %v81
    %v329 = vunpack.c.l.b16 %v82
    %v330 = vunpack.c.h.b16 %v82
    %v331 = vunpack.c.l.b16 %v83
    %v332 = vunpack.c.h.b16 %v83
    %v333 = vunpack.c.l.b16 %v84
    %v334 = vunpack.c.h.b16 %v84
    %v335 = vunpack.c.l.b16 %v85
    %v336 = vunpack.c.h.b16 %v85
    %v337 = vunpack.c.l.b16 %v86
    %v338 = vunpack.c.h.b16 %v86
    %v339 = vunpack.c.l.b16 %v87
    %v340 = vunpack.c.h.b16 %v87
    %v341 = vunpack.c.l.b16 %v88
    %v342 = vunpack.c.h.b16 %v88
    %v343 = vunpack.c.l.b16 %v89
    %v344 = vunpack.c.h.b16 %v89
    %v345 = vunpack.c.l.b16 %v90
    %v346 = vunpack.c.h.b16 %v90
    %v347 = vunpack.c.l.b16 %v91
    %v348 = vunpack.c.h.b16 %v91
    %v349 = vunpack.c.l.b16 %v92
    %v350 = vunpack.c.h.b16 %v92
    %v351 = vunpack.c.l.b16 %v93
    %v352 = vunpack.c.h.b16 %v93
    %v353 = vunpack.c.l.b16 %v94
    %v354 = vunpack.c.h.b16 %v94
    %v355 = vunpack.c.l.b16 %v95
    %v356 = vunpack.c.h.b16 %v95
    %v357 = vunpack.c.l.b16 %v96
    %v358 = vunpack.c.h.b16 %v96
    %v359 = vunpack.c.l.b16 %v97
    %v360 = vunpack.c.h.b16 %v97
    %v361 = vunpack.c.l.b16 %v98
    %v362 = vunpack.c.h.b16 %v98
    %v363 = vunpack.c.l.b16 %v99
    %v364 = vunpack.c.h.b16 %v99
    %v365 = vunpack.c.l.b16 %v100
    %v366 = vunpack.c.h.b16 %v100
    %v367 = vunpack.c.l.b16 %v101
    %v368 = vunpack.c.h.b16 %v101
    %v369 = vunpack.c.l.b16 %v102
    %v370 = vunpack.c.h.b16 %v102
    %v371 = vunpack.c.l.b16 %v103
    %v372 = vunpack.c.h.b16 %v103
    %v373 = vunpack.c.l.b16 %v104
    %v374 = vunpack.c.h.b16 %v104
    %v375 = vunpack.c.l.b16 %v105
    %v376 = vunpack.c.h.b16 %v105
    %v377 = vunpack.c.l.b16 %v106
    %v378 = vunpack.c.h.b16 %v106
    %v379 = vunpack.c.l.b16 %v107
    %v380 = vunpack.c.h.b16 %v107
    %v381 = vunpack.c.l.b16 %v108
    %v382 = vunpack.c.h.b16 %v108
    %v383 = vunpack.c.l.b16 %v109
    %v384 = vunpack.c.h.b16 %v109
    %v385 = vunpack.c.l.b16 %v110
    %v386 = vunpack.c.h.b16 %v110
    %v387 = vunpack.c.l.b16 %v111
    %v388 = vunpack.c.h.b16 %v111
    %v389 = vunpack.c.l.b16 %v112
    %v390 = vunpack.c.h.b16 %v112
    %v391 = vunpack.c.l.b16 %v113
    %v392 = vunpack.c.h.b16 %v113
    %v393 = vunpack.c.l.b16 %v114
    %v394 = vunpack.c.h.b16 %v114
    %v395 = vunpack.c.l.b16 %v115
    %v396 = vunpack.c.h.b16 %v115
    %v397 = vunpack.c.l.b16 %v116
    %v398 = vunpack.c.h.b16 %v116
    %v399 = vunpack.c.l.b16 %v117
    %v400 = vunpack.c.h.b16 %v117
    %v401 = vunpack.c.l.b16 %v118
    %v402 = vunpack.c.h.b16 %v118
    %v403 = vunpack.c.l.b16 %v119
    %v404 = vunpack.c.h.b16 %v119
    %v405 = vunpack.c.l.b16 %v120
    %v406 = vunpack.c.h.b16 %v120
    %v407 = vunpack.c.l.b16 %v121
    %v408 = vunpack.c.h.b16 %v121
    %v409 = vunpack.c.l.b16 %v122
    %v410 = vunpack.c.h.b16 %v122
    %v411 = vunpack.c.l.b16 %v123
    %v412 = vunpack.c.h.b16 %v123
    %v413 = vunpack.c.l.b16 %v124
    %v414 = vunpack.c.h.b16 %v124
    %v415 = vunpack.c.l.b16 %v125
    %v416 = vunpack.c.h.b16 %v125
    %v417 = vunpack.c.l.b16 %v126
    %v418 = vunpack.c.h.b16 %v126
    %v419 = vunpack.c.l.b16 %v127
    %v420 = vunpack.c.h.b16 %v127
    %v421 = vunpack.c.l.b16 %v128
    %v422 = vunpack.c.h.b16 %v128
    %v423 = vunpack.c.l.b16 %v129
    %v424 = vunpack.c.h.b16 %v129
    %v425 = vunpack.c.l.b16 %v130
    %v426 = vunpack.c.h.b16 %v130
    %v427 = vunpack.c.l.b16 %v131
    %v428 = vunpack.c.h.b16 %v131
    %v429 = vunpack.c.l.b16 %v132
    %v430 = vunpack.c.h.b16 %v132
    %v431 = vunpack.c.l.b16 %v133
    %v432 = vunpack.c.h.b16 %v133
    %v433 = vunpack.c.l.b16 %v134
    %v434 = vunpack.c.h.b16 %v134
    %v435 = vunpack.c.l.b16 %v135
    %v436 = vunpack.c.h.b16 %v135
    %v437 = vunpack.c.l.b16 %v136
    %v438 = vunpack.c.h.b16 %v136
    %v439 = vunpack.c.l.b16 %v137
    %v440 = vunpack.c.h.b16 %v137
    %v441 = vunpack.c.l.b16 %v138
    %v442 = vunpack.c.h.b16 %v138
    %v443 = vunpack.c.l.b16 %v139
    %v444 = vunpack.c.h.b16 %v139
    %v445 = vunpack.c.l.b16 %v140
    %v446 = vunpack.c.h.b16 %v140
    %v447 = vunpack.c.l.b16 %v141
    %v448 = vunpack.c.h.b16 %v141
    %v449 = vunpack.c.l.b16 %v142
    %v450 = vunpack.c.h.b16 %v142
    %v451 = vunpack.c.l.b16 %v143
    %v452 = vunpack.c.h.b16 %v143
    %v453 = vunpack.c.l.b16 %v144
    %v454 = vunpack.c.h.b16 %v144
    %v455 = vunpack.c.l.b16 %v145
    %v456 = vunpack.c.h.b16 %v145
    %v457 = vunpack.c.l.b16 %v146
    %v458 = vunpack.c.h.b16 %v146
    %v459 = vunpack.c.l.b16 %v147
    %v460 = vunpack.c.h.b16 %v147
    %v461 = vunpack.c.l.b16 %v148
    %v462 = vunpack.c.h.b16 %v148
    %v463 = vunpack.c.l.b16 %v149
    %v464 = vunpack.c.h.b16 %v149
    %v465 = vunpack.c.l.b16 %v150
    %v466 = vunpack.c.h.b16 %v150
    %v467 = vunpack.c.l.b16 %v151
    %v468 = vunpack.c.h.b16 %v151
    %v469 = vunpack.c.l.b16 %v152
    %v470 = vunpack.c.h.b16 %v152
    %v471 = vunpack.c.l.b16 %v153
    %v472 = vunpack.c.h.b16 %v153
    %v473 = vunpack.c.l.b16 %v154
    %v474 = vunpack.c.h.b16 %v154
    %v475 = vunpack.c.l.b16 %v155
    %v476 = vunpack.c.h.b16 %v155
    %v477 = vunpack.c.l.b16 %v156
    %v478 = vunpack.c.h.b16 %v156
    %v479 = vunpack.c.l.b16 %v157
    %v480 = vunpack.c.h.b16 %v157
    %v481 = vunpack.c.l.b16 %v158
    %v482 = vunpack.c.h.b16 %v158
    %v483 = vunpack.c.l.b16 %v159
    %v484 = vunpack.c.h.b16 %v159
    %v485 = vunpack.c.l.b16 %v160
    %v486 = vunpack.c.h.b16 %v160
    %v487 = vunpack.c.l.b16 %v161
    %v488 = vunpack.c.h.b16 %v161
    %v489 = vunpack.c.l.b16 %v162
    %v490 = vunpack.c.h.b16 %v162
    %v491 = vunpack.c.l.b16 %v163
    %v492 = vunpack.c.h.b16 %v163
    %v493 = vunpack.c.l.b16 %v164
    %v494 = vunpack.c.h.b16 %v164
    %v495 = vunpack.c.l.b16 %v165
    %v496 = vunpack.c.h.b16 %v165
    %v497 = vunpack.c.l.b16 %v166
    %v498 = vunpack.c.h.b16 %v166
    %v499 = vunpack.c.l.b16 %v167
    %v500 = vunpack.c.h.b16 %v167
    %v501 = vunpack.c.l.b16 %v168
    %v502 = vunpack.c.h.b16 %v168
    %v503 = vunpack.c.l.b16 %v169
    %v504 = vunpack.c.h.b16 %v169
    %v505 = vunpack.c.l.b16 %v170
    %v506 = vunpack.c.h.b16 %v170
    %v507 = vunpack.c.l.b16 %v171
    %v508 = vunpack.c.h.b16 %v171
    %v509 = vunpack.c.l.b16 %v172
    %v510 = vunpack.c.h.b16 %v172
    %v511 = vunpack.c.l.b16 %v173
    %v512 = vunpack.c.h.b16 %v173
    %v513 = vunpack.c.l.b16 %v174
    %v514 = vunpack.c.h.b16 %v174
    %v515 = vunpack.c.l.b16 %v175
    %v516 = vunpack.c.h.b16 %v175
    %v517 = vunpack.c.l.b16 %v176
    %v518 = vunpack.c.h.b16 %v176
    %v519 = vunpack.c.l.b16 %v177
    %v520 = vunpack.c.h.b16 %v177
    %v521 = vunpack.c.l.b16 %v178
    %v522 = vunpack.c.h.b16 %v178
    %v523 = vunpack.c.l.b16 %v179
    %v524 = vunpack.c.h.b16 %v179
    %v525 = vunpack.c.l.b16 %v180
    %v526 = vunpack.c.h.b16 %v180
    %v527 = vunpack.c.l.b16 %v181
    %v528 = vunpack.c.h.b16 %v181
    %v529 = vunpack.c.l.b16 %v182
    %v530 = vunpack.c.h.b16 %v182
    %v531 = vunpack.c.l.b16 %v183
    %v532 = vunpack.c.h.b16 %v183
    %v533 = vunpack.c.l.b16 %v184
    %v534 = vunpack.c.h.b16 %v184
    %v535 = vunpack.c.l.b16 %v185
    %v536 = vunpack.c.h.b16 %v185
    %v537 = vunpack.c.l.b16 %v186
    %v538 = vunpack.c.h.b16 %v186
    %v539 = vunpack.c.l.b16 %v187
    %v540 = vunpack.c.h.b16 %v187
    %v541 = vunpack.c.l.b16 %v188
    %v542 = vunpack.c.h.b16 %v188
    %v543 = vunpack.c.l.b16 %v189
    %v544 = vunpack.c.h.b16 %v189
    %v545 = vunpack.c.l.b16 %v190
    %v546 = vunpack.c.h.b16 %v190
    %v547 = vunpack.c.l.b16 %v191
    %v548 = vunpack.c.h.b16 %v191
    %v549 = vunpack.c.l.b16 %v192
    %v550 = vunpack.c.h.b16 %v192
    %v551 = vunpack.c.l.b16 %v193
    %v552 = vunpack.c.h.b16 %v193
    %v553 = vunpack.c.l.b16 %v194
    %v554 = vunpack.c.h.b16 %v194
    %v555 = vpack.c.b16 %v319, %v315
    %v556 = vpack.c.b16 %v320, %v316
    %v557 = vpack.c.b16 %v321, %v317
    %v558 = vpack.c.b16 %v322, %v318
    %v559 = vpack.c.b16 %v327, %v323
    %v560 = vpack.c.b16 %v328, %v324
    %v561 = vpack.c.b16 %v329, %v325
    %v562 = vpack.c.b16 %v330, %v326
    %v563 = vpack.c.b16 %v335, %v331
    %v564 = vpack.c.b16 %v336, %v332
    %v565 = vpack.c.b16 %v337, %v333
    %v566 = vpack.c.b16 %v338, %v334
    %v567 = vpack.c.b16 %v343, %v339
    %v568 = vpack.c.b16 %v344, %v340
    %v569 = vpack.c.b16 %v345, %v341
    %v570 = vpack.c.b16 %v346, %v342
    %v571 = vpack.c.b16 %v351, %v347
    %v572 = vpack.c.b16 %v352, %v348
    %v573 = vpack.c.b16 %v353, %v349
    %v574 = vpack.c.b16 %v354, %v350
    %v575 = vpack.c.b16 %v359, %v355
    %v576 = vpack.c.b16 %v360, %v356
    %v577 = vpack.c.b16 %v361, %v357
    %v578 = vpack.c.b16 %v362, %v358
    %v579 = vpack.c.b16 %v367, %v363
    %v580 = vpack.c.b16 %v368, %v364
    %v581 = vpack.c.b16 %v369, %v365
    %v582 = vpack.c.b16 %v370, %v366
    %v583 = vpack.c.b16 %v375, %v371
    %v584 = vpack.c.b16 %v376, %v372
    %v585 = vpack.c.b16 %v377, %v373
    %v586 = vpack.c.b16 %v378, %v374
    %v587 = vpack.c.b16 %v383, %v379
    %v588 = vpack.c.b16 %v384, %v380
    %v589 = vpack.c.b16 %v385, %v381
    %v590 = vpack.c.b16 %v386, %v382
    %v591 = vpack.c.b16 %v391, %v387
    %v592 = vpack.c.b16 %v392, %v388
    %v593 = vpack.c.b16 %v393, %v389
    %v594 = vpack.c.b16 %v394, %v390
    %v595 = vpack.c.b16 %v399, %v395
    %v596 = vpack.c.b16 %v400, %v396
    %v597 = vpack.c.b16 %v401, %v397
    %v598 = vpack.c.b16 %v402, %v398
    %v599 = vpack.c.b16 %v407, %v403
    %v600 = vpack.c.b16 %v408, %v404
    %v601 = vpack.c.b16 %v409, %v405
    %v602 = vpack.c.b16 %v410, %v406
    %v603 = vpack.c.b16 %v415, %v411
    %v604 = vpack.c.b16 %v416, %v412
    %v605 = vpack.c.b16 %v417, %v413
    %v606 = vpack.c.b16 %v418, %v414
    %v607 = vpack.c.b16 %v423, %v419
    %v608 = vpack.c.b16 %v424, %v420
    %v609 = vpack.c.b16 %v425, %v421
    %v610 = vpack.c.b16 %v426, %v422
    %v611 = vpack.c.b16 %v431, %v427
    %v612 = vpack.c.b16 %v432, %v428
    %v613 = vpack.c.b16 %v433, %v429
    %v614 = vpack.c.b16 %v434, %v430
    %v615 = vpack.c.b16 %v439, %v435
    %v616 = vpack.c.b16 %v440, %v436
    %v617 = vpack.c.b16 %v441, %v437
    %v618 = vpack.c.b16 %v442, %v438
    %v619 = vpack.c.b16 %v447, %v443
    %v620 = vpack.c.b16 %v448, %v444
    %v621 = vpack.c.b16 %v449, %v445
    %v622 = vpack.c.b16 %v450, %v446
    %v623 = vpack.c.b16 %v455, %v451
    %v624 = vpack.c.b16 %v456, %v452
    %v625 = vpack.c.b16 %v457, %v453
    %v626 = vpack.c.b16 %v458, %v454
    %v627 = vpack.c.b16 %v463, %v459
    %v628 = vpack.c.b16 %v464, %v460
    %v629 = vpack.c.b16 %v465, %v461
    %v630 = vpack.c.b16 %v466, %v462
    %v631 = vpack.c.b16 %v471, %v467
    %v632 = vpack.c.b16 %v472, %v468
    %v633 = vpack.c.b16 %v473, %v469
    %v634 = vpack.c.b16 %v474, %v470
    %v635 = vpack.c.b16 %v479, %v475
    %v636 = vpack.c.b16 %v480, %v476
    %v637 = vpack.c.b16 %v481, %v477
    %v638 = vpack.c.b16 %v482, %v478
    %v639 = vpack.c.b16 %v487, %v483
    %v640 = vpack.c.b16 %v488, %v484
    %v641 = vpack.c.b16 %v489, %v485
    %v642 = vpack.c.b16 %v490, %v486
    %v643 = vpack.c.b16 %v495, %v491
    %v644 = vpack.c.b16 %v496, %v492
    %v645 = vpack.c.b16 %v497, %v493
    %v646 = vpack.c.b16 %v498, %v494
    %v647 = vpack.c.b16 %v503, %v499
    %v648 = vpack.c.b16 %v504, %v500
    %v649 = vpack.c.b16 %v505, %v501
    %v650 = vpack.c.b16 %v506, %v502
    %v651 = vpack.c.b16 %v511, %v507
    %v652 = vpack.c.b16 %v512, %v508
    %v653 = vpack.c.b16 %v513, %v509
    %v654 = vpack.c.b16 %v514, %v510
    %v655 = vpack.c.b16 %v519, %v515
    %v656 = vpack.c.b16 %v520, %v516
    %v657 = vpack.c.b16 %v521, %v517
    %v658 = vpack.c.b16 %v522, %v518
    %v659 = vpack.c.b16 %v527, %v523
    %v660 = vpack.c.b16 %v528, %v524
    %v661 = vpack.c.b16 %v529, %v525
    %v662 = vpack.c.b16 %v530, %v526
    %v663 = vpack.c.b16 %v535, %v531
    %v664 = vpack.c.b16 %v536, %v532
    %v665 = vpack.c.b16 %v537, %v533
    %v666 = vpack.c.b16 %v538, %v534
    %v667 = vpack.c.b16 %v543, %v539
    %v668 = vpack.c.b16 %v544, %v540
    %v669 = vpack.c.b16 %v545, %v541
    %v670 = vpack.c.b16 %v546, %v542
    %v671 = vpack.c.b16 %v551, %v547
    %v672 = vpack.c.b16 %v552, %v548
    %v673 = vpack.c.b16 %v553, %v549
    %v674 = vpack.c.b16 %v554, %v550
    %vm795 = vcmask 785408
    %v797 = vsel %vm795, %v44, 0
    %799 = vmatprep.subr.bf16.mxu0 %v556
    %800 = vmatpush1.bf16.msra.mxu0 %v555
    %801 = vmatprep.subr.bf16.mxu0 %v560
    %802 = vmatpush1.bf16.msra.mxu0 %v559
    %803 = vmatprep.subr.bf16.mxu0 %v564
    %804 = vmatpush1.bf16.msra.mxu0 %v563
    %805 = vmatprep.subr.bf16.mxu0 %v568
    %806 = vmatpush1.bf16.msra.mxu0 %v567
    %807 = vmatprep.subr.bf16.mxu0 %v572
    %808 = vmatpush1.bf16.msra.mxu0 %v571
    %809 = vmatprep.subr.bf16.mxu0 %v576
    %810 = vmatpush1.bf16.msra.mxu0 %v575
    %811 = vmatprep.subr.bf16.mxu0 %v580
    %812 = vmatpush1.bf16.msra.mxu0 %v579
    %813 = vmatprep.subr.bf16.mxu0 %v584
    %814 = vmatpush1.bf16.msra.mxu0 %v583
    %815 = vmatprep.subr.bf16.mxu0 %v588
    %816 = vmatpush1.bf16.msra.mxu0 %v587
    %817 = vmatprep.subr.bf16.mxu0 %v592
    %818 = vmatpush1.bf16.msra.mxu0 %v591
    %819 = vmatprep.subr.bf16.mxu0 %v596
    %820 = vmatpush1.bf16.msra.mxu0 %v595
    %821 = vmatprep.subr.bf16.mxu0 %v600
    %822 = vmatpush1.bf16.msra.mxu0 %v599
    %823 = vmatprep.subr.bf16.mxu0 %v604
    %824 = vmatpush1.bf16.msra.mxu0 %v603
    %825 = vmatprep.subr.bf16.mxu0 %v608
    %826 = vmatpush1.bf16.msra.mxu0 %v607
    %827 = vmatprep.subr.bf16.mxu0 %v612
    %828 = vmatpush1.bf16.msra.mxu0 %v611
    %829 = vmatprep.subr.bf16.mxu0 %v616
    %830 = vmatpush1.bf16.msra.mxu0 %v615
    %831 = vmatprep.mubr.bf16.mxu0 %v42
    %832 = vmatmul.mubr.bf16.gmra.mrb[0].mxu0 %v41
    %v833 = vpop.f32.mrb[0].mxu0
    %v834 = vadd.f32 0.0, %v833
    %v835 = vpop.f32.mrb[0].mxu0
    %v836 = vadd.f32 0.0, %v835
    %v837 = vpop.f32.mrb[0].mxu0
    %v838 = vpop.f32.mrb[0].mxu0
    %839 = vdwg.mxu0
    %840 = vmatprep.subr.bf16.mxu0 %v620
    %841 = vmatpush1.bf16.msra.mxu0 %v619
    %842 = vmatprep.subr.bf16.mxu0 %v624
    %843 = vmatpush1.bf16.msra.mxu0 %v623
    %844 = vmatprep.subr.bf16.mxu0 %v628
    %845 = vmatpush1.bf16.msra.mxu0 %v627
    %846 = vmatprep.subr.bf16.mxu0 %v632
    %847 = vmatpush1.bf16.msra.mxu0 %v631
    %848 = vmatprep.subr.bf16.mxu0 %v636
    %849 = vmatpush1.bf16.msra.mxu0 %v635
    %850 = vmatprep.subr.bf16.mxu0 %v640
    %851 = vmatpush1.bf16.msra.mxu0 %v639
    %852 = vmatprep.subr.bf16.mxu0 %v644
    %853 = vmatpush1.bf16.msra.mxu0 %v643
    %854 = vmatprep.subr.bf16.mxu0 %v648
    %855 = vmatpush1.bf16.msra.mxu0 %v647
    %856 = vmatprep.subr.bf16.mxu0 %v652
    %857 = vmatpush1.bf16.msra.mxu0 %v651
    %858 = vmatprep.subr.bf16.mxu0 %v656
    %859 = vmatpush1.bf16.msra.mxu0 %v655
    %860 = vmatprep.subr.bf16.mxu0 %v660
    %861 = vmatpush1.bf16.msra.mxu0 %v659
    %862 = vmatprep.subr.bf16.mxu0 %v664
    %863 = vmatpush1.bf16.msra.mxu0 %v663
    %864 = vmatprep.subr.bf16.mxu0 %v668
    %865 = vmatpush1.bf16.msra.mxu0 %v667
    %866 = vmatprep.subr.bf16.mxu0 %v672
    %867 = vmatpush1.bf16.msra.mxu0 %v671
    %868 = vmatprep.subr.bf16.mxu0 0
    %869 = vmatpush1.bf16.msra.mxu0 0
    %870 = vmatprep.subr.bf16.mxu0 0
    %871 = vmatpush1.bf16.msra.mxu0 0
    %872 = vmatprep.mubr.bf16.mxu0 %v797
    %873 = vmatmul.mubr.bf16.gmra.mrb[0].mxu0 %v43
    %v874 = vpop.f32.mrb[0].mxu0
    %v875 = vadd.f32 %v834, %v874
    %v876 = vpop.f32.mrb[0].mxu0
    %v877 = vadd.f32 %v836, %v876
    %v878 = vpop.f32.mrb[0].mxu0
    %v879 = vpop.f32.mrb[0].mxu0
    %880 = vdwg.mxu0
    %881 = vmatprep.subr.bf16.mxu0 %v558
    %882 = vmatpush1.bf16.msra.mxu0 %v557
    %883 = vmatprep.subr.bf16.mxu0 %v562
    %884 = vmatpush1.bf16.msra.mxu0 %v561
    %885 = vmatprep.subr.bf16.mxu0 %v566
    %886 = vmatpush1.bf16.msra.mxu0 %v565
    %887 = vmatprep.subr.bf16.mxu0 %v570
    %888 = vmatpush1.bf16.msra.mxu0 %v569
    %889 = vmatprep.subr.bf16.mxu0 %v574
    %890 = vmatpush1.bf16.msra.mxu0 %v573
    %891 = vmatprep.subr.bf16.mxu0 %v578
    %892 = vmatpush1.bf16.msra.mxu0 %v577
    %893 = vmatprep.subr.bf16.mxu0 %v582
    %894 = vmatpush1.bf16.msra.mxu0 %v581
    %895 = vmatprep.subr.bf16.mxu0 %v586
    %896 = vmatpush1.bf16.msra.mxu0 %v585
    %897 = vmatprep.subr.bf16.mxu0 %v590
    %898 = vmatpush1.bf16.msra.mxu0 %v589
    %899 = vmatprep.subr.bf16.mxu0 %v594
    %900 = vmatpush1.bf16.msra.mxu0 %v593
    %901 = vmatprep.subr.bf16.mxu0 %v598
    %902 = vmatpush1.bf16.msra.mxu0 %v597
    %903 = vmatprep.subr.bf16.mxu0 %v602
    %904 = vmatpush1.bf16.msra.mxu0 %v601
    %905 = vmatprep.subr.bf16.mxu0 %v606
    %906 = vmatpush1.bf16.msra.mxu0 %v605
    %907 = vmatprep.subr.bf16.mxu0 %v610
    %908 = vmatpush1.bf16.msra.mxu0 %v609
    %909 = vmatprep.subr.bf16.mxu0 %v614
    %910 = vmatpush1.bf16.msra.mxu0 %v613
    %911 = vmatprep.subr.bf16.mxu0 %v618
    %912 = vmatpush1.bf16.msra.mxu0 %v617
    %913 = vmatprep.mubr.bf16.mxu0 %v42
    %914 = vmatmul.mubr.bf16.gmra.mrb[0].mxu0 %v41
    %v915 = vpop.f32.mrb[0].mxu0
    %v916 = vadd.f32 0.0, %v915
    %v917 = vpop.f32.mrb[0].mxu0
    %v918 = vadd.f32 0.0, %v917
    %v919 = vpop.f32.mrb[0].mxu0
    %v920 = vpop.f32.mrb[0].mxu0
    %921 = vdwg.mxu0
    %922 = vmatprep.subr.bf16.mxu0 %v622
    %923 = vmatpush1.bf16.msra.mxu0 %v621
    %924 = vmatprep.subr.bf16.mxu0 %v626
    %925 = vmatpush1.bf16.msra.mxu0 %v625
    %926 = vmatprep.subr.bf16.mxu0 %v630
    %927 = vmatpush1.bf16.msra.mxu0 %v629
    %928 = vmatprep.subr.bf16.mxu0 %v634
    %929 = vmatpush1.bf16.msra.mxu0 %v633
    %930 = vmatprep.subr.bf16.mxu0 %v638
    %931 = vmatpush1.bf16.msra.mxu0 %v637
    %932 = vmatprep.subr.bf16.mxu0 %v642
    %933 = vmatpush1.bf16.msra.mxu0 %v641
    %934 = vmatprep.subr.bf16.mxu0 %v646
    %935 = vmatpush1.bf16.msra.mxu0 %v645
    %936 = vmatprep.subr.bf16.mxu0 %v650
    %937 = vmatpush1.bf16.msra.mxu0 %v649
    %938 = vmatprep.subr.bf16.mxu0 %v654
    %939 = vmatpush1.bf16.msra.mxu0 %v653
    %940 = vmatprep.subr.bf16.mxu0 %v658
    %941 = vmatpush1.bf16.msra.mxu0 %v657
    %942 = vmatprep.subr.bf16.mxu0 %v662
    %943 = vmatpush1.bf16.msra.mxu0 %v661
    %944 = vmatprep.subr.bf16.mxu0 %v666
    %945 = vmatpush1.bf16.msra.mxu0 %v665
    %946 = vmatprep.subr.bf16.mxu0 %v670
    %947 = vmatpush1.bf16.msra.mxu0 %v669
    %948 = vmatprep.subr.bf16.mxu0 %v674
    %949 = vmatpush1.bf16.msra.mxu0 %v673
    %950 = vmatprep.subr.bf16.mxu0 0
    %951 = vmatpush1.bf16.msra.mxu0 0
    %952 = vmatprep.subr.bf16.mxu0 0
    %953 = vmatpush1.bf16.msra.mxu0 0
    %954 = vmatprep.mubr.bf16.mxu0 %v797
    %955 = vmatmul.mubr.bf16.gmra.mrb[0].mxu0 %v43
    %v956 = vpop.f32.mrb[0].mxu0
    %v957 = vadd.f32 %v916, %v956
    %v958 = vpop.f32.mrb[0].mxu0
    %v959 = vadd.f32 %v918, %v958
    %v960 = vpop.f32.mrb[0].mxu0
    %v961 = vpop.f32.mrb[0].mxu0
    %962 = vdwg.mxu0
    %v993 = vunpack.c.l.b16 %v45
    %v994 = vunpack.c.h.b16 %v45
    %v995 = vunpack.c.l.b16 %v46
    %v996 = vunpack.c.h.b16 %v46
    %v997 = vunpack.c.l.b16 %v47
    %v998 = vunpack.c.h.b16 %v47
    %v999 = vunpack.c.l.b16 %v48
    %v1000 = vunpack.c.h.b16 %v48
    %v1001 = vunpack.c.l.b16 %v49
    %v1002 = vunpack.c.h.b16 %v49
    %v1003 = vunpack.c.l.b16 %v50
    %v1004 = vunpack.c.h.b16 %v50
    %v1005 = vunpack.c.l.b16 %v51
    %v1006 = vunpack.c.h.b16 %v51
    %v1007 = vunpack.c.l.b16 %v52
    %v1008 = vunpack.c.h.b16 %v52
    %v1009 = vunpack.c.l.b16 %v53
    %v1010 = vunpack.c.h.b16 %v53
    %v1011 = vunpack.c.l.b16 %v54
    %v1012 = vunpack.c.h.b16 %v54
    %v1013 = vunpack.c.l.b16 %v55
    %v1014 = vunpack.c.h.b16 %v55
    %v1015 = vunpack.c.l.b16 %v56
    %v1016 = vunpack.c.h.b16 %v56
    %v1017 = vunpack.c.l.b16 %v57
    %v1018 = vunpack.c.h.b16 %v57
    %v1019 = vunpack.c.l.b16 %v58
    %v1020 = vunpack.c.h.b16 %v58
    %v1021 = vunpack.c.l.b16 %v59
    %v1022 = vunpack.c.h.b16 %v59
    %v1023 = vunpack.c.l.b16 %v60
    %v1024 = vunpack.c.h.b16 %v60
    %v1025 = vunpack.c.l.b16 %v61
    %v1026 = vunpack.c.h.b16 %v61
    %v1027 = vunpack.c.l.b16 %v62
    %v1028 = vunpack.c.h.b16 %v62
    %v1029 = vunpack.c.l.b16 %v63
    %v1030 = vunpack.c.h.b16 %v63
    %v1031 = vunpack.c.l.b16 %v64
    %v1032 = vunpack.c.h.b16 %v64
    %v1033 = vunpack.c.l.b16 %v65
    %v1034 = vunpack.c.h.b16 %v65
    %v1035 = vunpack.c.l.b16 %v66
    %v1036 = vunpack.c.h.b16 %v66
    %v1037 = vunpack.c.l.b16 %v67
    %v1038 = vunpack.c.h.b16 %v67
    %v1039 = vunpack.c.l.b16 %v68
    %v1040 = vunpack.c.h.b16 %v68
    %v1041 = vunpack.c.l.b16 %v69
    %v1042 = vunpack.c.h.b16 %v69
    %v1043 = vunpack.c.l.b16 %v70
    %v1044 = vunpack.c.h.b16 %v70
    %v1045 = vunpack.c.l.b16 %v71
    %v1046 = vunpack.c.h.b16 %v71
    %v1047 = vunpack.c.l.b16 %v72
    %v1048 = vunpack.c.h.b16 %v72
    %v1049 = vunpack.c.l.b16 %v73
    %v1050 = vunpack.c.h.b16 %v73
    %v1051 = vunpack.c.l.b16 %v74
    %v1052 = vunpack.c.h.b16 %v74
    %v1053 = vpack.c.b16 %v997, %v993
    %v1054 = vpack.c.b16 %v998, %v994
    %v1055 = vpack.c.b16 %v999, %v995
    %v1056 = vpack.c.b16 %v1000, %v996
    %v1057 = vpack.c.b16 %v1005, %v1001
    %v1058 = vpack.c.b16 %v1006, %v1002
    %v1059 = vpack.c.b16 %v1007, %v1003
    %v1060 = vpack.c.b16 %v1008, %v1004
    %v1061 = vpack.c.b16 %v1013, %v1009
    %v1062 = vpack.c.b16 %v1014, %v1010
    %v1063 = vpack.c.b16 %v1015, %v1011
    %v1064 = vpack.c.b16 %v1016, %v1012
    %v1065 = vpack.c.b16 %v1021, %v1017
    %v1066 = vpack.c.b16 %v1022, %v1018
    %v1067 = vpack.c.b16 %v1023, %v1019
    %v1068 = vpack.c.b16 %v1024, %v1020
    %v1069 = vpack.c.b16 %v1029, %v1025
    %v1070 = vpack.c.b16 %v1030, %v1026
    %v1071 = vpack.c.b16 %v1031, %v1027
    %v1072 = vpack.c.b16 %v1032, %v1028
    %v1073 = vpack.c.b16 %v1037, %v1033
    %v1074 = vpack.c.b16 %v1038, %v1034
    %v1075 = vpack.c.b16 %v1039, %v1035
    %v1076 = vpack.c.b16 %v1040, %v1036
    %v1077 = vpack.c.b16 %v1045, %v1041
    %v1078 = vpack.c.b16 %v1046, %v1042
    %v1079 = vpack.c.b16 %v1047, %v1043
    %v1080 = vpack.c.b16 %v1048, %v1044
    %v1081 = vpack.c.b16 %v1049, %v1049
    %v1082 = vpack.c.b16 %v1050, %v1050
    %v1083 = vpack.c.b16 %v1051, %v1051
    %v1084 = vpack.c.b16 %v1052, %v1052
    %vm1113 = vcmask 982016
    %v1115 = vsel %vm1113, %v36, 0
    %vm1117 = vcmask 1043456
    %v1119 = vsel %vm1117, %v1081, 0
    %v1122 = vsel %vm1117, %v1082, 0
    %v1125 = vsel %vm1117, %v1083, 0
    %v1128 = vsel %vm1117, %v1084, 0
    %1130 = vmatprep.subr.bf16.mxu0 %v1054
    %1131 = vmatpush1.bf16.msra.mxu0 %v1053
    %1132 = vmatprep.subr.bf16.mxu0 %v1058
    %1133 = vmatpush1.bf16.msra.mxu0 %v1057
    %1134 = vmatprep.subr.bf16.mxu0 %v1062
    %1135 = vmatpush1.bf16.msra.mxu0 %v1061
    %1136 = vmatprep.subr.bf16.mxu0 %v1066
    %1137 = vmatpush1.bf16.msra.mxu0 %v1065
    %1138 = vmatprep.subr.bf16.mxu0 %v1070
    %1139 = vmatpush1.bf16.msra.mxu0 %v1069
    %1140 = vmatprep.subr.bf16.mxu0 %v1074
    %1141 = vmatpush1.bf16.msra.mxu0 %v1073
    %1142 = vmatprep.subr.bf16.mxu0 %v1078
    %1143 = vmatpush1.bf16.msra.mxu0 %v1077
    %1144 = vmatprep.subr.bf16.mxu0 %v1122
    %1145 = vmatpush1.bf16.msra.mxu0 %v1119
    %1146 = vmatprep.subr.bf16.mxu0 0
    %1147 = vmatpush1.bf16.msra.mxu0 0
    %1148 = vmatprep.subr.bf16.mxu0 0
    %1149 = vmatpush1.bf16.msra.mxu0 0
    %1150 = vmatprep.subr.bf16.mxu0 0
    %1151 = vmatpush1.bf16.msra.mxu0 0
    %1152 = vmatprep.subr.bf16.mxu0 0
    %1153 = vmatpush1.bf16.msra.mxu0 0
    %1154 = vmatprep.subr.bf16.mxu0 0
    %1155 = vmatpush1.bf16.msra.mxu0 0
    %1156 = vmatprep.subr.bf16.mxu0 0
    %1157 = vmatpush1.bf16.msra.mxu0 0
    %1158 = vmatprep.subr.bf16.mxu0 0
    %1159 = vmatpush1.bf16.msra.mxu0 0
    %1160 = vmatprep.subr.bf16.mxu0 0
    %1161 = vmatpush1.bf16.msra.mxu0 0
    %1162 = vmatprep.mubr.bf16.mxu0 0
    %1163 = vmatmul.mubr.bf16.gmra.mrb[0].mxu0 %v1115
    %v1164 = vpop.f32.mrb[0].mxu0
    %v1165 = vadd.f32 %v875, %v1164
    %v1166 = vpop.f32.mrb[0].mxu0
    %v1167 = vadd.f32 %v877, %v1166
    %v1168 = vpop.f32.mrb[0].mxu0
    %v1169 = vpop.f32.mrb[0].mxu0
    %1170 = vdwg.mxu0
    %1171 = vmatprep.subr.bf16.mxu0 %v1056
    %1172 = vmatpush1.bf16.msra.mxu0 %v1055
    %1173 = vmatprep.subr.bf16.mxu0 %v1060
    %1174 = vmatpush1.bf16.msra.mxu0 %v1059
    %1175 = vmatprep.subr.bf16.mxu0 %v1064
    %1176 = vmatpush1.bf16.msra.mxu0 %v1063
    %1177 = vmatprep.subr.bf16.mxu0 %v1068
    %1178 = vmatpush1.bf16.msra.mxu0 %v1067
    %1179 = vmatprep.subr.bf16.mxu0 %v1072
    %1180 = vmatpush1.bf16.msra.mxu0 %v1071
    %1181 = vmatprep.subr.bf16.mxu0 %v1076
    %1182 = vmatpush1.bf16.msra.mxu0 %v1075
    %1183 = vmatprep.subr.bf16.mxu0 %v1080
    %1184 = vmatpush1.bf16.msra.mxu0 %v1079
    %1185 = vmatprep.subr.bf16.mxu0 %v1128
    %1186 = vmatpush1.bf16.msra.mxu0 %v1125
    %1187 = vmatprep.subr.bf16.mxu0 0
    %1188 = vmatpush1.bf16.msra.mxu0 0
    %1189 = vmatprep.subr.bf16.mxu0 0
    %1190 = vmatpush1.bf16.msra.mxu0 0
    %1191 = vmatprep.subr.bf16.mxu0 0
    %1192 = vmatpush1.bf16.msra.mxu0 0
    %1193 = vmatprep.subr.bf16.mxu0 0
    %1194 = vmatpush1.bf16.msra.mxu0 0
    %1195 = vmatprep.subr.bf16.mxu0 0
    %1196 = vmatpush1.bf16.msra.mxu0 0
    %1197 = vmatprep.subr.bf16.mxu0 0
    %1198 = vmatpush1.bf16.msra.mxu0 0
    %1199 = vmatprep.subr.bf16.mxu0 0
    %1200 = vmatpush1.bf16.msra.mxu0 0
    %1201 = vmatprep.subr.bf16.mxu0 0
    %1202 = vmatpush1.bf16.msra.mxu0 0
    %1203 = vmatprep.mubr.bf16.mxu0 0
    %1204 = vmatmul.mubr.bf16.gmra.mrb[0].mxu0 %v1115
    %v1205 = vpop.f32.mrb[0].mxu0
    %v1206 = vadd.f32 %v957, %v1205
    %v1207 = vpop.f32.mrb[0].mxu0
    %v1208 = vadd.f32 %v959, %v1207
    %v1209 = vpop.f32.mrb[0].mxu0
    %v1210 = vpop.f32.mrb[0].mxu0
    %1211 = vdwg.mxu0
    %v1212 = vld [vmem:[%s4] sm:$0xf]
    %v1214 = vlaneseq
    %v1215 = vshrl.u32 %v1214, 7
    %v1216 = vsub.s32 0, %v1215
    %v1217 = vrot.slane %v1212, %v1216
    %v1218 = vlaneseq
    %v1219 = vshrl.u32 %v1218, 7
    %v1220 = vsub.s32 1, %v1219
    %v1221 = vrot.slane %v1212, %v1220
    %v1222 = vlaneseq
    %v1223 = vshrl.u32 %v1222, 7
    %v1224 = vsub.s32 2, %v1223
    %v1225 = vrot.slane %v1212, %v1224
    %v1226 = vlaneseq
    %v1227 = vshrl.u32 %v1226, 7
    %v1228 = vsub.s32 3, %v1227
    %v1229 = vrot.slane %v1212, %v1228
    %v1234 = vadd.f32 %v1165, %v1217
    %v1235 = vadd.f32 %v1167, %v1221
    %v1236 = vadd.f32 %v1206, %v1225
    %v1237 = vadd.f32 %v1208, %v1229
    %v1238 = vtanh.pop %v1234
    %v1239 = vtanh.pop %v1235
    %v1240 = vtanh.pop %v1236
    %v1241 = vtanh.pop %v1237
    %1242 = vst [vmem:[%s5] sm:$0xff] %v1238
    %1243 = vst [vmem:[%s5 + $0x8] sm:$0xff] %v1239
    %1244 = vst [vmem:[%s5 + $0x10] sm:$0xff] %v1240
    %1245 = vst.msk [vmem:[%s5 + $0x18] sm:$0xff] %vm795, %v1241
    // Predicated region
    $region26: #{simple_acmlp_forward.1} parent=1 // pred_check
      _
    $region27: #{simple_acmlp_forward.1} parent=1 // pred_check_branch
      %1247 = sbr.rel (0) target = $region29
    $region28: #{simple_acmlp_forward.1} parent=1 // pred_region
      _
    $region29: #{simple_acmlp_forward.1} parent=1 // pred_fallthru
      _
    // Predicated region
    $region30: #{simple_acmlp_forward.1} parent=1 // pred_check
      _
    $region31: #{simple_acmlp_forward.1} parent=1 // pred_check_branch
      %1249 = sbr.rel (0) target = $region33
    $region32: #{simple_acmlp_forward.1} parent=1 // pred_region
      _
    $region33: #{simple_acmlp_forward.1} parent=1 // pred_fallthru
      _
    %1250 = vsyncpa [#allocation3], 1

</llo_original>
